<compile_context>
chip_gen: v7x
topology: tpu7x:2x2x1
jax: 0.10.0
libtpu: 0.0.40
codegen_flags: <defaults>
</compile_context>

<pallas_src>
import functools

import jax
import jax.numpy as jnp
from jax.experimental import pallas as pl
from jax.experimental.pallas import tpu as pltpu

HIDDEN = 126      # logical hidden size (forced by the hard-coded nn.Linear(126,126))
OUTPUT = 20       # output_size (vocab)
MAX_LEN = 10      # max_length

HP = 128          # padded hidden (lane aligned)
OP = 128          # padded vocab  (lane-dense logits store)
LP = 128          # padded max_length (lane-dense attention-weight store)

_NEG = -1e30      # finite stand-in for -inf in masked softmax

# merged weight slab columns: [W_eff | enc | Wc_bot | W_out]
_C_EFF = 0
_C_ENC = LP
_C_CMB = LP + HP
_C_OUT = LP + 2 * HP
_WM_W = LP + 2 * HP + OP          # 512

# merged bias slab columns: [b_eff | b_gru | b_out]
_B_EFF = 0
_B_GRU = LP
_B_OUT = LP + 4 * HP
_BA_W = LP + 4 * HP + OP          # 768


def _attn_decoder_kernel(
    tok_ref,        # scalar prefetch: (T,) int32 token ids (SMEM)
    ecomb_ref,      # (OUTPUT, 1, HP) f32   precombined embedding table (emb@Wc_top^T + b_comb)
    wm_ref,         # (HP, 512)       bf16  merged [W_eff | enc | Wc_bot | W_out]
    wgru_ref,       # (2HP, 4HP)      bf16  fused GRU weights -> [r_pre | z_pre | gi_n | gh_n]
    ball_ref,       # (1, 768)        f32   merged biases [b_eff | b_gru | b_out]
    h0_ref,         # (1, HP)         f32   initial hidden
    out_ref,        # (T, 1, OP)      f32   per-step log-softmax (padded lanes ~ -1e30)
    hnew_ref,       # (1, HP)         f32   final hidden
    w2_ref,         # (T, 1, LP)      f32   per-step attention weights (padded lanes = 0)
):
    f32, bf16 = jnp.float32, jnp.bfloat16
    T = out_ref.shape[0]

    # ---- loop-invariant values hoisted out of the decode loop ----
    lmask = jax.lax.broadcasted_iota(jnp.int32, (1, LP), 1) < MAX_LEN
    omask = jax.lax.broadcasted_iota(jnp.int32, (1, OP), 1) < OUTPUT
    b_eff = ball_ref[:, _B_EFF:_B_EFF + LP]
    b_gru = ball_ref[:, _B_GRU:_B_GRU + 4 * HP]
    b_out = ball_ref[:, _B_OUT:_B_OUT + OP]

    def step(t, h):
        h_b = h.astype(bf16)
        tok = tok_ref[t]

        # embedding(+dropout) half of attn_combine, precombined at pack time
        # TODO(synk): nn.Dropout(p=0.1) on the embedding is applied as identity (eval mode).
        ec = ecomb_ref[tok]                                                    # (1, HP) f32

        # ---- bilinear attention: softmax((h @ W_bil^T + b_bil) @ enc^T) == softmax(h@W_eff + b_eff)
        # TODO(synk): torch builds a *fresh random* nn.Linear(126,126) every forward();
        #             here W_bil/b_bil are fixed parameters folded into W_eff/b_eff.
        transf = jnp.dot(h_b, wm_ref[:, _C_EFF:_C_EFF + LP],
                         preferred_element_type=f32) + b_eff                   # (1, LP)
        transf = jnp.where(lmask, transf, _NEG)
        m = jnp.max(transf, axis=1, keepdims=True)
        e = jnp.exp(transf - m)
        w2 = e / jnp.sum(e, axis=1, keepdims=True)       # exact divide: w2 is user-visible
        w2_ref[t] = w2.astype(w2_ref.dtype)

        applied = jnp.dot(w2.astype(bf16), wm_ref[:, _C_ENC:_C_ENC + HP],
                          preferred_element_type=f32)                          # (1, HP)

        # ---- attn_combine(cat(embedded, applied)) + ReLU (embedding half precombined) ----
        o = jnp.maximum(
            ec + jnp.dot(applied.astype(bf16), wm_ref[:, _C_CMB:_C_CMB + HP],
                         preferred_element_type=f32), 0.0)                     # (1, HP)

        # ---- single-step GRU fused to ONE (1,2HP)@(2HP,4HP) push: [r_pre | z_pre | gi_n | gh_n]
        xh = jnp.concatenate([o.astype(bf16), h_b], axis=1)                    # (1, 2HP)
        g = jnp.dot(xh, wgru_ref[...], preferred_element_type=f32) + b_gru     # (1, 4HP)
        r = jax.nn.sigmoid(g[:, 0:HP])
        z = jax.nn.sigmoid(g[:, HP:2 * HP])
        n = jnp.tanh(g[:, 2 * HP:3 * HP] + r * g[:, 3 * HP:4 * HP])
        h_new = (1.0 - z) * n + z * h                                          # (1, HP)

        # ---- output projection + log_softmax ----
        logits = jnp.dot(h_new.astype(bf16), wm_ref[:, _C_OUT:_C_OUT + OP],
                         preferred_element_type=f32) + b_out                   # (1, OP)
        logits = jnp.where(omask, logits, _NEG)
        lm = jnp.max(logits, axis=1, keepdims=True)
        lse = lm + jnp.log(jnp.sum(jnp.exp(logits - lm), axis=1, keepdims=True))
        out_ref[t] = (logits - lse).astype(out_ref.dtype)

        return h_new

    h_fin = jax.lax.fori_loop(0, T, step, h0_ref[...], unroll=True)
    hnew_ref[...] = h_fin.astype(hnew_ref.dtype)


# ----------------------------------------------------------------------------- wrappers

def init_params(key, hidden=HIDDEN, output=OUTPUT):
    """PyTorch-style init at the logical (unpadded) shapes and layouts."""
    ks = jax.random.split(key, 12)

    def u(k, shape, fan_in):
        b = 1.0 / jnp.sqrt(jnp.float32(fan_in))
        return jax.random.uniform(k, shape, jnp.float32, -b, b)

    return {
        "embedding": jax.random.normal(ks[0], (output, hidden), jnp.float32),
        # NOTE: torch builds a fresh random nn.Linear(126,126) every forward();
        # here it is a fixed deterministic parameter.
        "w_bil": u(ks[1], (hidden, hidden), hidden),            # torch layout (out, in)
        "b_bil": u(ks[2], (hidden,), hidden),
        "w_comb": u(ks[3], (hidden, 2 * hidden), 2 * hidden),   # attn_combine (out, in)
        "b_comb": u(ks[4], (hidden,), 2 * hidden),
        "w_ih": u(ks[5], (3 * hidden, hidden), hidden),         # GRU [r;z;n]
        "w_hh": u(ks[6], (3 * hidden, hidden), hidden),
        "b_ih": u(ks[7], (3 * hidden,), hidden),
        "b_hh": u(ks[8], (3 * hidden,), hidden),
        "w_out": u(ks[9], (output, hidden), hidden),
        "b_out": u(ks[10], (output,), hidden),
    }


def _pad2(x, rows, cols):
    return jnp.pad(x, ((0, rows - x.shape[0]), (0, cols - x.shape[1])))


def pack_params(p, hidden=HIDDEN, output=OUTPUT):
    """Pad to 128 lanes, pre-transpose to (in,out), precombine embedding half of
    attn_combine, stack GRU gates into one 4HP-wide slab, cast MXU operands to bf16."""
    H, O = hidden, output
    bf16, f32 = jnp.bfloat16, jnp.float32

    wc = p["w_comb"]                                    # (H, 2H) torch (out, in): [embedded | applied]
    # E_comb[v] = embedding[v] @ Wc_top^T + b_comb   (f32, VMEM-resident table)
    ecomb = p["embedding"] @ wc[:, :H].T + p["b_comb"][None, :]            # (O, H)
    ecomb = _pad2(ecomb, O, HP).reshape(O, 1, HP).astype(f32)
    wc_bot = _pad2(wc[:, H:].T, HP, HP).astype(bf16)                       # applied half, (in,out)

    # fused GRU weights:  [o | h] @ W_gru + b_gru -> [r_pre | z_pre | gi_n | gh_n]
    wi, wh = p["w_ih"], p["w_hh"]                       # (3H, H), gate order [r; z; n]
    bi, bh = p["b_ih"], p["b_hh"]
    zpad = jnp.zeros((HP, HP), f32)

    def gp(w):                                          # (H,H) torch (out,in) -> (HP,HP) (in,out)
        return _pad2(w.T, HP, HP)

    top = jnp.concatenate([gp(wi[0:H]), gp(wi[H:2 * H]), gp(wi[2 * H:3 * H]), zpad], axis=1)
    bot = jnp.concatenate([gp(wh[0:H]), gp(wh[H:2 * H]), zpad, gp(wh[2 * H:3 * H])], axis=1)
    w_gru = jnp.concatenate([top, bot], axis=0).astype(bf16)               # (2HP, 4HP)

    def bp(b):                                          # (H,) -> (1, HP)
        return _pad2(b[None, :], 1, HP)

    b_gru = jnp.concatenate(
        [bp(bi[0:H] + bh[0:H]), bp(bi[H:2 * H] + bh[H:2 * H]),
         bp(bi[2 * H:3 * H]), bp(bh[2 * H:3 * H])], axis=1).astype(f32)    # (1, 4HP)

    return {
        "ecomb": ecomb,
        "w_bilT": _pad2(p["w_bil"].T, HP, HP).astype(f32),    # f32: folded into W_eff per call
        "b_bil": _pad2(p["b_bil"][None, :], 1, HP).astype(f32),
        "wc_bot": wc_bot,
        "w_gru": w_gru, "b_gru": b_gru,
        "w_out": _pad2(p["w_out"].T, HP, OP).astype(bf16),
        "b_out": _pad2(p["b_out"][None, :], 1, OP).astype(f32),
    }


def _build_call(T):
    def const_spec(shape):
        zeros = (0,) * len(shape)
        return pl.BlockSpec(shape, lambda i, tok, _z=zeros: _z)

    grid_spec = pltpu.PrefetchScalarGridSpec(
        num_scalar_prefetch=1,
        grid=(1,),                                    # single launch; decode loop lives in-kernel
        in_specs=[
            const_spec((OUTPUT, 1, HP)),              # E_comb table
            const_spec((HP, _WM_W)),                  # merged [W_eff | enc | Wc_bot | W_out]
            const_spec((2 * HP, 4 * HP)),             # fused GRU weights
            const_spec((1, _BA_W)),                   # merged biases
            const_spec((1, HP)),                      # initial hidden
        ],
        out_specs=[
            const_spec((T, 1, OP)),                   # per-step log-softmax
            const_spec((1, HP)),                      # final hidden
            const_spec((T, 1, LP)),                   # per-step attention weights
        ],
    )
    out_shapes = (
        jax.ShapeDtypeStruct((T, 1, OP), jnp.float32),
        jax.ShapeDtypeStruct((1, HP), jnp.float32),
        jax.ShapeDtypeStruct((T, 1, LP), jnp.float32),
    )
    return pl.pallas_call(
        _attn_decoder_kernel,
        grid_spec=grid_spec,
        out_shape=out_shapes,
        compiler_params=pltpu.CompilerParams(dimension_semantics=("arbitrary",)),
    )


@functools.partial(jax.jit, static_argnums=(4,))
def _forward_impl(tokens, hidden, encoder_outputs, packed, T):
    f32, bf16 = jnp.float32, jnp.bfloat16
    h0 = _pad2(hidden.reshape(1, HIDDEN).astype(f32), 1, HP)
    enc = _pad2(encoder_outputs.astype(f32), LP, HP)                       # (LP, HP)

    # per-sequence precompute: fold the bilinear Linear into enc^T (one MXU push removed/step)
    w_eff = jnp.dot(packed["w_bilT"], enc.T)                               # (HP, LP) f32
    b_eff = jnp.dot(packed["b_bil"], enc.T)                                # (1, LP)  f32

    wm = jnp.concatenate(
        [w_eff.astype(bf16), enc.astype(bf16), packed["wc_bot"], packed["w_out"]],
        axis=1)                                                            # (HP, 512) bf16
    b_all = jnp.concatenate([b_eff, packed["b_gru"], packed["b_out"]], axis=1)  # (1, 768) f32

    out_p, hnew_p, w2_p = _build_call(T)(
        tokens, packed["ecomb"], wm, packed["w_gru"], b_all, h0)

    o = out_p[:, 0, :OUTPUT]                             # (T, OUTPUT)
    h_new = hnew_p[:, :HIDDEN].reshape(1, 1, HIDDEN)     # (1, 1, HIDDEN)
    w2 = w2_p[:, 0, :MAX_LEN]                            # (T, MAX_LEN)
    return o, h_new, w2


def attn_decoder_forward(tokens, hidden, encoder_outputs, packed):
    """tokens: scalar int or (T,) int32; hidden: (1,1,HIDDEN); encoder_outputs: (MAX_LEN, HIDDEN)."""
    tokens = jnp.atleast_1d(jnp.asarray(tokens, jnp.int32))
    T = int(tokens.shape[0])
    return _forward_impl(tokens, hidden, encoder_outputs, packed, T)


if __name__ == "__main__":
    key = jax.random.PRNGKey(0)
    pkey, ekey = jax.random.split(key)

    params = init_params(pkey)
    packed = pack_params(params)

    encoder_outputs = jax.random.normal(ekey, (MAX_LEN, HIDDEN), jnp.float32)
    hidden0 = jnp.zeros((1, 1, HIDDEN), jnp.float32)     # initHidden()
    token = jnp.array(3, dtype=jnp.int32)

    # Single decode step — matches the PyTorch forward() signature / return shapes.
    o, h_new, w2 = attn_decoder_forward(token, hidden0, encoder_outputs, packed)
    jax.block_until_ready((o, h_new, w2))
    assert o.shape == (1, OUTPUT)
    assert h_new.shape == (1, 1, HIDDEN)
    assert w2.shape == (1, MAX_LEN)
    assert abs(float(jnp.sum(w2[0])) - 1.0) < 1e-3            # softmax sanity (exact divide)
    assert abs(float(jnp.sum(jnp.exp(o[0]))) - 1.0) < 1e-2    # log-softmax sanity

    # Fused multi-step (teacher-forced) decode: ONE launch, in-kernel fori_loop over tokens.
    tokens = jnp.array([3, 1, 7, 4], dtype=jnp.int32)
    o_seq, h_seq, w2_seq = attn_decoder_forward(tokens, hidden0, encoder_outputs, packed)
    jax.block_until_ready((o_seq, h_seq, w2_seq))
    assert o_seq.shape == (4, OUTPUT)
    assert h_seq.shape == (1, 1, HIDDEN)
    assert w2_seq.shape == (4, MAX_LEN)
    assert abs(float(jnp.sum(w2_seq[3])) - 1.0) < 1e-3
    assert abs(float(jnp.sum(jnp.exp(o_seq[3]))) - 1.0) < 1e-2

    print("KERNEL_OK")
</pallas_src>

<mosaic_0001>
module attributes {stable_mosaic.version = 11 : i64} {
  func.func @_attn_decoder_kernel(%arg0: i32, %arg1: memref<1xi32, #tpu.memory_space<smem>>, %arg2: memref<20x1x128xf32, #tpu.memory_space<vmem>>, %arg3: memref<128x512xbf16, #tpu.memory_space<vmem>>, %arg4: memref<256x512xbf16, #tpu.memory_space<vmem>>, %arg5: memref<1x768xf32, #tpu.memory_space<vmem>>, %arg6: memref<1x128xf32, #tpu.memory_space<vmem>>, %arg7: memref<1x1x128xf32, #tpu.memory_space<vmem>>, %arg8: memref<1x128xf32, #tpu.memory_space<vmem>>, %arg9: memref<1x1x128xf32, #tpu.memory_space<vmem>>) attributes {dimension_semantics = [#tpu.dimension_semantics<arbitrary>], iteration_bounds = array<i64: 1>, scalar_prefetch = 1 : i64, scratch_operands = 0 : i64, tpu.core_type = #tpu.core_type<tc>, window_params = [{pipeline_mode = #tpu.pipeline_mode<synchronous>, transform_indices = @transform_0, window_bounds = array<i64: 20, 1, 128>}, {pipeline_mode = #tpu.pipeline_mode<synchronous>, transform_indices = @transform_1, window_bounds = array<i64: 128, 512>}, {pipeline_mode = #tpu.pipeline_mode<synchronous>, transform_indices = @transform_2, window_bounds = array<i64: 256, 512>}, {pipeline_mode = #tpu.pipeline_mode<synchronous>, transform_indices = @transform_3, window_bounds = array<i64: 1, 768>}, {pipeline_mode = #tpu.pipeline_mode<synchronous>, transform_indices = @transform_4, window_bounds = array<i64: 1, 128>}, {pipeline_mode = #tpu.pipeline_mode<synchronous>, transform_indices = @transform_5, window_bounds = array<i64: 1, 1, 128>}, {pipeline_mode = #tpu.pipeline_mode<synchronous>, transform_indices = @transform_6, window_bounds = array<i64: 1, 128>}, {pipeline_mode = #tpu.pipeline_mode<synchronous>, transform_indices = @transform_7, window_bounds = array<i64: 1, 1, 128>}]} {
    %0 = tpu.iota {dimensions = array<i32: 1>} : vector<1x128xi32>
    %c10_i32 = arith.constant 10 : i32
    %1 = vector.broadcast %c10_i32 : i32 to vector<1x128xi32>
    %2 = arith.cmpi slt, %0, %1 : vector<1x128xi32>
    %3 = tpu.iota {dimensions = array<i32: 1>} : vector<1x128xi32>
    %c20_i32 = arith.constant 20 : i32
    %4 = vector.broadcast %c20_i32 : i32 to vector<1x128xi32>
    %5 = arith.cmpi slt, %3, %4 : vector<1x128xi32>
    %c0 = arith.constant 0 : index
    %c0_0 = arith.constant 0 : index
    %6 = vector.load %arg5[%c0, %c0_0] : memref<1x768xf32, #tpu.memory_space<vmem>>, vector<1x128xf32>
    %c0_1 = arith.constant 0 : index
    %c128 = arith.constant 128 : index
    %7 = vector.load %arg5[%c0_1, %c128] : memref<1x768xf32, #tpu.memory_space<vmem>>, vector<1x512xf32>
    %c0_2 = arith.constant 0 : index
    %c640 = arith.constant 640 : index
    %8 = vector.load %arg5[%c0_2, %c640] : memref<1x768xf32, #tpu.memory_space<vmem>>, vector<1x128xf32>
    %c0_3 = arith.constant 0 : index
    %c0_4 = arith.constant 0 : index
    %9 = vector.load %arg6[%c0_3, %c0_4] : memref<1x128xf32, #tpu.memory_space<vmem>>, vector<1x128xf32>
    %c0_i32 = arith.constant 0 : i32
    %10 = arith.truncf %9 : vector<1x128xf32> to vector<1x128xbf16>
    %11 = arith.index_cast %c0_i32 : i32 to index
    %12 = memref.load %arg1[%11] : memref<1xi32, #tpu.memory_space<smem>>
    %13 = arith.index_cast %12 : i32 to index
    %c0_5 = arith.constant 0 : index
    %c0_6 = arith.constant 0 : index
    %14 = vector.load %arg2[%13, %c0_5, %c0_6] : memref<20x1x128xf32, #tpu.memory_space<vmem>>, vector<1x1x128xf32>
    %15 = vector.shape_cast %14 : vector<1x1x128xf32> to vector<1x128xf32>
    %c0_7 = arith.constant 0 : index
    %c0_8 = arith.constant 0 : index
    %16 = vector.load %arg3[%c0_7, %c0_8] : memref<128x512xbf16, #tpu.memory_space<vmem>>, vector<128x128xbf16>
    %cst = arith.constant dense<0.000000e+00> : vector<1x128xf32>
    %17 = tpu.matmul %10, %16, %cst {dimension_numbers = #tpu.dot_dimension_numbers<[1], [0], [0], [1], [0, 0, 1, 1], [], []>} : vector<1x128xbf16>, vector<128x128xbf16>, vector<1x128xf32> -> vector<1x128xf32>
    %18 = arith.addf %17, %6 : vector<1x128xf32>
    %cst_9 = arith.constant -1.000000e+30 : f32
    %19 = vector.broadcast %cst_9 : f32 to vector<1x128xf32>
    %20 = arith.select %2, %18, %19 : vector<1x128xi1>, vector<1x128xf32>
    %cst_10 = arith.constant dense<0xFF800000> : vector<1xf32>
    %21 = vector.multi_reduction <maximumf>, %20, %cst_10 [1] : vector<1x128xf32> to vector<1xf32>
    %22 = vector.shape_cast %21 : vector<1xf32> to vector<1x1xf32>
    %23 = vector.broadcast %22 : vector<1x1xf32> to vector<1x128xf32>
    %24 = arith.subf %20, %23 : vector<1x128xf32>
    %25 = math.exp %24 : vector<1x128xf32>
    %cst_11 = arith.constant dense<0.000000e+00> : vector<1xf32>
    %26 = vector.multi_reduction <add>, %25, %cst_11 [1] : vector<1x128xf32> to vector<1xf32>
    %27 = vector.shape_cast %26 : vector<1xf32> to vector<1x1xf32>
    %28 = vector.broadcast %27 : vector<1x1xf32> to vector<1x128xf32>
    %29 = arith.divf %25, %28 : vector<1x128xf32>
    %30 = arith.index_cast %c0_i32 : i32 to index
    %c0_12 = arith.constant 0 : index
    %c0_13 = arith.constant 0 : index
    %31 = vector.load %arg9[%30, %c0_12, %c0_13] : memref<1x1x128xf32, #tpu.memory_space<vmem>>, vector<1x1x128xf32>
    %32 = vector.shape_cast %31 : vector<1x1x128xf32> to vector<1x128xf32>
    %33 = vector.shape_cast %29 : vector<1x128xf32> to vector<1x1x128xf32>
    tpu.vector_store %arg9[%30, %c0_12, %c0_13], %33 {strides = array<i32>} : memref<1x1x128xf32, #tpu.memory_space<vmem>>, vector<1x1x128xf32>,
    %34 = arith.truncf %29 : vector<1x128xf32> to vector<1x128xbf16>
    %c0_14 = arith.constant 0 : index
    %c128_15 = arith.constant 128 : index
    %35 = vector.load %arg3[%c0_14, %c128_15] : memref<128x512xbf16, #tpu.memory_space<vmem>>, vector<128x128xbf16>
    %cst_16 = arith.constant dense<0.000000e+00> : vector<1x128xf32>
    %36 = tpu.matmul %34, %35, %cst_16 {dimension_numbers = #tpu.dot_dimension_numbers<[1], [0], [0], [1], [0, 0, 1, 1], [], []>} : vector<1x128xbf16>, vector<128x128xbf16>, vector<1x128xf32> -> vector<1x128xf32>
    %37 = arith.truncf %36 : vector<1x128xf32> to vector<1x128xbf16>
    %c0_17 = arith.constant 0 : index
    %c256 = arith.constant 256 : index
    %38 = vector.load %arg3[%c0_17, %c256] : memref<128x512xbf16, #tpu.memory_space<vmem>>, vector<128x128xbf16>
    %cst_18 = arith.constant dense<0.000000e+00> : vector<1x128xf32>
    %39 = tpu.matmul %37, %38, %cst_18 {dimension_numbers = #tpu.dot_dimension_numbers<[1], [0], [0], [1], [0, 0, 1, 1], [], []>} : vector<1x128xbf16>, vector<128x128xbf16>, vector<1x128xf32> -> vector<1x128xf32>
    %40 = arith.addf %15, %39 : vector<1x128xf32>
    %cst_19 = arith.constant 0.000000e+00 : f32
    %41 = vector.broadcast %cst_19 : f32 to vector<1x128xf32>
    %42 = arith.maximumf %40, %41 : vector<1x128xf32>
    %43 = arith.truncf %42 : vector<1x128xf32> to vector<1x128xbf16>
    %44 = tpu.concatenate %43, %10 in 1 : vector<1x128xbf16>, vector<1x128xbf16> -> vector<1x256xbf16>
    %c0_20 = arith.constant 0 : index
    %c0_21 = arith.constant 0 : index
    %45 = vector.load %arg4[%c0_20, %c0_21] : memref<256x512xbf16, #tpu.memory_space<vmem>>, vector<256x512xbf16>
    %cst_22 = arith.constant dense<0.000000e+00> : vector<1x512xf32>
    %46 = tpu.matmul %44, %45, %cst_22 {dimension_numbers = #tpu.dot_dimension_numbers<[1], [0], [0], [1], [0, 0, 1, 1], [], []>} : vector<1x256xbf16>, vector<256x512xbf16>, vector<1x512xf32> -> vector<1x512xf32>
    %47 = arith.addf %46, %7 : vector<1x512xf32>
    %48 = vector.extract_strided_slice %47 {offsets = [0, 0], sizes = [1, 128], strides = [1, 1]} : vector<1x512xf32> to vector<1x128xf32>
    %49 = arith.negf %48 : vector<1x128xf32>
    %50 = math.exp %49 : vector<1x128xf32>
    %cst_23 = arith.constant 1.000000e+00 : f32
    %51 = vector.broadcast %cst_23 : f32 to vector<1x128xf32>
    %52 = arith.addf %51, %50 : vector<1x128xf32>
    %53 = arith.divf %51, %52 : vector<1x128xf32>
    %54 = vector.extract_strided_slice %47 {offsets = [0, 128], sizes = [1, 128], strides = [1, 1]} : vector<1x512xf32> to vector<1x128xf32>
    %55 = arith.negf %54 : vector<1x128xf32>
    %56 = math.exp %55 : vector<1x128xf32>
    %cst_24 = arith.constant 1.000000e+00 : f32
    %57 = vector.broadcast %cst_24 : f32 to vector<1x128xf32>
    %58 = arith.addf %57, %56 : vector<1x128xf32>
    %59 = arith.divf %57, %58 : vector<1x128xf32>
    %60 = vector.extract_strided_slice %47 {offsets = [0, 256], sizes = [1, 128], strides = [1, 1]} : vector<1x512xf32> to vector<1x128xf32>
    %61 = vector.extract_strided_slice %47 {offsets = [0, 384], sizes = [1, 128], strides = [1, 1]} : vector<1x512xf32> to vector<1x128xf32>
    %62 = arith.mulf %53, %61 : vector<1x128xf32>
    %63 = arith.addf %60, %62 : vector<1x128xf32>
    %64 = math.tanh %63 : vector<1x128xf32>
    %cst_25 = arith.constant 1.000000e+00 : f32
    %65 = vector.broadcast %cst_25 : f32 to vector<1x128xf32>
    %66 = arith.subf %65, %59 : vector<1x128xf32>
    %67 = arith.mulf %66, %64 : vector<1x128xf32>
    %68 = arith.mulf %59, %9 : vector<1x128xf32>
    %69 = arith.addf %67, %68 : vector<1x128xf32>
    %70 = arith.truncf %69 : vector<1x128xf32> to vector<1x128xbf16>
    %c0_26 = arith.constant 0 : index
    %c384 = arith.constant 384 : index
    %71 = vector.load %arg3[%c0_26, %c384] : memref<128x512xbf16, #tpu.memory_space<vmem>>, vector<128x128xbf16>
    %cst_27 = arith.constant dense<0.000000e+00> : vector<1x128xf32>
    %72 = tpu.matmul %70, %71, %cst_27 {dimension_numbers = #tpu.dot_dimension_numbers<[1], [0], [0], [1], [0, 0, 1, 1], [], []>} : vector<1x128xbf16>, vector<128x128xbf16>, vector<1x128xf32> -> vector<1x128xf32>
    %73 = arith.addf %72, %8 : vector<1x128xf32>
    %cst_28 = arith.constant -1.000000e+30 : f32
    %74 = vector.broadcast %cst_28 : f32 to vector<1x128xf32>
    %75 = arith.select %5, %73, %74 : vector<1x128xi1>, vector<1x128xf32>
    %cst_29 = arith.constant dense<0xFF800000> : vector<1xf32>
    %76 = vector.multi_reduction <maximumf>, %75, %cst_29 [1] : vector<1x128xf32> to vector<1xf32>
    %77 = vector.shape_cast %76 : vector<1xf32> to vector<1x1xf32>
    %78 = vector.broadcast %77 : vector<1x1xf32> to vector<1x128xf32>
    %79 = arith.subf %75, %78 : vector<1x128xf32>
    %80 = math.exp %79 : vector<1x128xf32>
    %cst_30 = arith.constant dense<0.000000e+00> : vector<1xf32>
    %81 = vector.multi_reduction <add>, %80, %cst_30 [1] : vector<1x128xf32> to vector<1xf32>
    %82 = vector.shape_cast %81 : vector<1xf32> to vector<1x1xf32>
    %83 = math.log %82 : vector<1x1xf32>
    %84 = arith.addf %77, %83 : vector<1x1xf32>
    %85 = vector.broadcast %84 : vector<1x1xf32> to vector<1x128xf32>
    %86 = arith.subf %75, %85 : vector<1x128xf32>
    %87 = arith.index_cast %c0_i32 : i32 to index
    %c0_31 = arith.constant 0 : index
    %c0_32 = arith.constant 0 : index
    %88 = vector.load %arg7[%87, %c0_31, %c0_32] : memref<1x1x128xf32, #tpu.memory_space<vmem>>, vector<1x1x128xf32>
    %89 = vector.shape_cast %88 : vector<1x1x128xf32> to vector<1x128xf32>
    %90 = vector.shape_cast %86 : vector<1x128xf32> to vector<1x1x128xf32>
    tpu.vector_store %arg7[%87, %c0_31, %c0_32], %90 {strides = array<i32>} : memref<1x1x128xf32, #tpu.memory_space<vmem>>, vector<1x1x128xf32>,
    %c1_i32 = arith.constant 1 : i32
    %c0_33 = arith.constant 0 : index
    %c0_34 = arith.constant 0 : index
    %91 = vector.load %arg8[%c0_33, %c0_34] : memref<1x128xf32, #tpu.memory_space<vmem>>, vector<1x128xf32>
    tpu.vector_store %arg8[%c0_33, %c0_34], %69 {strides = array<i32>} : memref<1x128xf32, #tpu.memory_space<vmem>>, vector<1x128xf32>,
    return
  }
  func.func @transform_0(%arg0: i32, %arg1: memref<1xi32, #tpu.memory_space<smem>>) -> (i32, i32, i32) {
    %c0_i32 = arith.constant 0 : i32
    %c0_i32_0 = arith.constant 0 : i32
    %c0_i32_1 = arith.constant 0 : i32
    %c0_i32_2 = arith.constant 0 : i32
    return %c0_i32, %c0_i32_0, %c0_i32_1 : i32, i32, i32
  }
  func.func @transform_1(%arg0: i32, %arg1: memref<1xi32, #tpu.memory_space<smem>>) -> (i32, i32) {
    %c0_i32 = arith.constant 0 : i32
    %c0_i32_0 = arith.constant 0 : i32
    %c0_i32_1 = arith.constant 0 : i32
    return %c0_i32, %c0_i32_0 : i32, i32
  }
  func.func @transform_2(%arg0: i32, %arg1: memref<1xi32, #tpu.memory_space<smem>>) -> (i32, i32) {
    %c0_i32 = arith.constant 0 : i32
    %c0_i32_0 = arith.constant 0 : i32
    %c0_i32_1 = arith.constant 0 : i32
    return %c0_i32, %c0_i32_0 : i32, i32
  }
  func.func @transform_3(%arg0: i32, %arg1: memref<1xi32, #tpu.memory_space<smem>>) -> (i32, i32) {
    %c0_i32 = arith.constant 0 : i32
    %c0_i32_0 = arith.constant 0 : i32
    %c0_i32_1 = arith.constant 0 : i32
    return %c0_i32, %c0_i32_0 : i32, i32
  }
  func.func @transform_4(%arg0: i32, %arg1: memref<1xi32, #tpu.memory_space<smem>>) -> (i32, i32) {
    %c0_i32 = arith.constant 0 : i32
    %c0_i32_0 = arith.constant 0 : i32
    %c0_i32_1 = arith.constant 0 : i32
    return %c0_i32, %c0_i32_0 : i32, i32
  }
  func.func @transform_5(%arg0: i32, %arg1: memref<1xi32, #tpu.memory_space<smem>>) -> (i32, i32, i32) {
    %c0_i32 = arith.constant 0 : i32
    %c0_i32_0 = arith.constant 0 : i32
    %c0_i32_1 = arith.constant 0 : i32
    %c0_i32_2 = arith.constant 0 : i32
    return %c0_i32, %c0_i32_0, %c0_i32_1 : i32, i32, i32
  }
  func.func @transform_6(%arg0: i32, %arg1: memref<1xi32, #tpu.memory_space<smem>>) -> (i32, i32) {
    %c0_i32 = arith.constant 0 : i32
    %c0_i32_0 = arith.constant 0 : i32
    %c0_i32_1 = arith.constant 0 : i32
    return %c0_i32, %c0_i32_0 : i32, i32
  }
  func.func @transform_7(%arg0: i32, %arg1: memref<1xi32, #tpu.memory_space<smem>>) -> (i32, i32, i32) {
    %c0_i32 = arith.constant 0 : i32
    %c0_i32_0 = arith.constant 0 : i32
    %c0_i32_1 = arith.constant 0 : i32
    %c0_i32_2 = arith.constant 0 : i32
    return %c0_i32, %c0_i32_0, %c0_i32_1 : i32, i32, i32
  }
}

</mosaic_0001>

<llo_original>
// kernel: _forward_impl.1
$region0: #{_forward_impl.1}
  #allocation0 [shape = 'u32[]', space=smem, size = 0x4, offset = 0x4, fixed_abs, tag = 'smem constant byte address 0x4 - core index']
  #allocation1 [shape = 'u32[144,128]{1,0:T(1,128)}', space=vmem, size = 0x12000, scoped, tag = 'internal scratch']
  #allocation2 [shape = 's32[1]{0}', space=sflag, size = 0x4, scoped, tag = 'scoped memory for _forward_impl.1']
  #allocation3 [shape = 's32[1]{0:T(128)S(6)}', space=smem, size = 0x200, scoped, tag = 'prefetched SMEM operand 0']
  %s0 = inlined_call_operand.<no memory space> [shape: s32[1], index: 0, kind: input, shape index: {}]
  %s1 = inlined_call_operand.vmem [shape: f32[20,1,128], index: 1, kind: input, shape index: {}]
  %s2 = inlined_call_operand.vmem [shape: bf16[128,512], index: 2, kind: input, shape index: {}]
  %s3 = inlined_call_operand.vmem [shape: bf16[256,512], index: 3, kind: input, shape index: {}]
  %s4 = inlined_call_operand.vmem [shape: f32[1,768], index: 4, kind: input, shape index: {}]
  %s5 = inlined_call_operand.vmem [shape: f32[1,128], index: 5, kind: input, shape index: {}]
  %s6 = inlined_call_operand.vmem [shape: f32[1,1,128], index: 6, kind: output, shape index: {0}]
  %s7 = inlined_call_operand.vmem [shape: f32[1,128], index: 7, kind: output, shape index: {1}]
  %s8 = inlined_call_operand.vmem [shape: f32[1,1,128], index: 8, kind: output, shape index: {2}]
  %9 = xla_tuple %s6, %s7, %s8
  %s10 = sld [smem:[#allocation0]]
  $region46: #{_forward_impl.1} parent=0
    _
  %s12 = ssub.s32 1, %s10
  %s13 = scalar_select 0, %s12, %s10
  %14 = sst [smem:[#allocation3]] %s0
  // Predicated region
  $region2: #{_forward_impl.1} parent=0 // pred_check
    _
  $region3: #{_forward_impl.1} parent=0 // pred_check_branch
    %16 = sbr.rel (0) target = $region5
  $region4: #{_forward_impl.1} parent=0 // pred_region
    _
  $region5: #{_forward_impl.1} parent=0 // pred_fallthru
    _
  // Predicated region
  $region6: #{_forward_impl.1} parent=0 // pred_check
    _
  $region7: #{_forward_impl.1} parent=0 // pred_check_branch
    %18 = sbr.rel (0) target = $region9
  $region8: #{_forward_impl.1} parent=0 // pred_region
    _
  $region9: #{_forward_impl.1} parent=0 // pred_fallthru
    _
  // Predicated region
  $region10: #{_forward_impl.1} parent=0 // pred_check
    _
  $region11: #{_forward_impl.1} parent=0 // pred_check_branch
    %20 = sbr.rel (0) target = $region13
  $region12: #{_forward_impl.1} parent=0 // pred_region
    _
  $region13: #{_forward_impl.1} parent=0 // pred_fallthru
    _
  // Predicated region
  $region14: #{_forward_impl.1} parent=0 // pred_check
    _
  $region15: #{_forward_impl.1} parent=0 // pred_check_branch
    %22 = sbr.rel (0) target = $region17
  $region16: #{_forward_impl.1} parent=0 // pred_region
    _
  $region17: #{_forward_impl.1} parent=0 // pred_fallthru
    _
  // Predicated region
  $region18: #{_forward_impl.1} parent=0 // pred_check
    _
  $region19: #{_forward_impl.1} parent=0 // pred_check_branch
    %24 = sbr.rel (0) target = $region21
  $region20: #{_forward_impl.1} parent=0 // pred_region
    _
  $region21: #{_forward_impl.1} parent=0 // pred_fallthru
    _
  %v26 = vlaneseq
  %v27 = vand.u32 %v26, 127
  %vm28 = vcmp.lt.s32.totalorder %v27, 10
  %vm29 = vcmp.lt.s32.totalorder %v27, 20
  %v30 = vld [vmem:[%s4] sm:$0x1]
  %v31 = vld [vmem:[%s4 + $0x1] sm:$0xf]
  %v32 = vld [vmem:[%s4 + $0x5] sm:$0x1]
  %v33 = vld [vmem:[%s5] sm:$0x1]
  %v34 = vpack.c.bf16 %v33, %v33
  %s35 = sld [smem:[#allocation3]]
  %s36 = scalar_lea.vmem %s1, %s35
  %v37 = vld [vmem:[%s36] sm:$0x1]
  %v38 = vld [vmem:[%s2] sm:$0xf]
  %v39 = vld [vmem:[%s2 + $0x10] sm:$0xf]
  %v40 = vld [vmem:[%s2 + $0x20] sm:$0xf]
  %v41 = vld [vmem:[%s2 + $0x30] sm:$0xf]
  %v42 = vld [vmem:[%s2 + $0x40] sm:$0xf]
  %v43 = vld [vmem:[%s2 + $0x50] sm:$0xf]
  %v44 = vld [vmem:[%s2 + $0x60] sm:$0xf]
  %v45 = vld [vmem:[%s2 + $0x70] sm:$0xf]
  %v46 = vld [vmem:[%s2 + $0x80] sm:$0xf]
  %v47 = vld [vmem:[%s2 + $0x90] sm:$0xf]
  %v48 = vld [vmem:[%s2 + $0xa0] sm:$0xf]
  %v49 = vld [vmem:[%s2 + $0xb0] sm:$0xf]
  %v50 = vld [vmem:[%s2 + $0xc0] sm:$0xf]
  %v51 = vld [vmem:[%s2 + $0xd0] sm:$0xf]
  %v52 = vld [vmem:[%s2 + $0xe0] sm:$0xf]
  %v53 = vld [vmem:[%s2 + $0xf0] sm:$0xf]
  %v70 = vunpack.c.l.b16 %v38
  %v71 = vunpack.c.l.b16 %v39
  %v72 = vunpack.c.l.b16 %v40
  %v73 = vunpack.c.l.b16 %v41
  %v74 = vunpack.c.l.b16 %v42
  %v75 = vunpack.c.l.b16 %v43
  %v76 = vunpack.c.l.b16 %v44
  %v77 = vunpack.c.l.b16 %v45
  %v78 = vunpack.c.l.b16 %v46
  %v79 = vunpack.c.l.b16 %v47
  %v80 = vunpack.c.l.b16 %v48
  %v81 = vunpack.c.l.b16 %v49
  %v82 = vunpack.c.l.b16 %v50
  %v83 = vunpack.c.l.b16 %v51
  %v84 = vunpack.c.l.b16 %v52
  %v85 = vunpack.c.l.b16 %v53
  %v86 = vpack.c.b16 %v71, %v70
  %v87 = vpack.c.b16 %v73, %v72
  %v88 = vpack.c.b16 %v75, %v74
  %v89 = vpack.c.b16 %v77, %v76
  %v90 = vpack.c.b16 %v79, %v78
  %v91 = vpack.c.b16 %v81, %v80
  %v92 = vpack.c.b16 %v83, %v82
  %v93 = vpack.c.b16 %v85, %v84
  %102 = vmatprep.subr.bf16.mxu0 0
  %103 = vmatpush1.bf16.msra.mxu0 %v86
  %104 = vmatprep.subr.bf16.mxu0 0
  %105 = vmatpush1.bf16.msra.mxu0 %v87
  %106 = vmatprep.subr.bf16.mxu0 0
  %107 = vmatpush1.bf16.msra.mxu0 %v88
  %108 = vmatprep.subr.bf16.mxu0 0
  %109 = vmatpush1.bf16.msra.mxu0 %v89
  %110 = vmatprep.subr.bf16.mxu0 0
  %111 = vmatpush1.bf16.msra.mxu0 %v90
  %112 = vmatprep.subr.bf16.mxu0 0
  %113 = vmatpush1.bf16.msra.mxu0 %v91
  %114 = vmatprep.subr.bf16.mxu0 0
  %115 = vmatpush1.bf16.msra.mxu0 %v92
  %116 = vmatprep.subr.bf16.mxu0 0
  %117 = vmatpush1.bf16.msra.mxu0 %v93
  %118 = vmatprep.subr.bf16.mxu0 0
  %119 = vmatpush1.bf16.msra.mxu0 0
  %120 = vmatprep.subr.bf16.mxu0 0
  %121 = vmatpush1.bf16.msra.mxu0 0
  %122 = vmatprep.subr.bf16.mxu0 0
  %123 = vmatpush1.bf16.msra.mxu0 0
  %124 = vmatprep.subr.bf16.mxu0 0
  %125 = vmatpush1.bf16.msra.mxu0 0
  %126 = vmatprep.subr.bf16.mxu0 0
  %127 = vmatpush1.bf16.msra.mxu0 0
  %128 = vmatprep.subr.bf16.mxu0 0
  %129 = vmatpush1.bf16.msra.mxu0 0
  %130 = vmatprep.subr.bf16.mxu0 0
  %131 = vmatpush1.bf16.msra.mxu0 0
  %132 = vmatprep.subr.bf16.mxu0 0
  %133 = vmatpush1.bf16.msra.mxu0 0
  %134 = vmatprep.mubr.bf16.mxu0 0
  %135 = vmatmul.mubr.bf16.gmra.mrb[0].mxu0 %v34
  %v136 = vpop.f32.mrb[0].mxu0
  %v137 = vadd.f32 %v30, %v136
  %v138 = vpop.f32.mrb[0].mxu0
  %v139 = vpop.f32.mrb[0].mxu0
  %v140 = vpop.f32.mrb[0].mxu0
  %141 = vdwg.mxu0
  %v142 = vsel %vm28, %v137, -1e+30
  %vm143 = vcmask 1040384
  %v144 = vsel %vm143, %v142, -inf
  %145 = vmax.xlane.f32.xlu0 %v144
  %v146 = vpop.xlane.xlu0 %145
  %v147 = vsub.f32 %v142, %v146
  %v148 = vmul.f32 %v147, 1.442695
  %v149 = vpow.pop %v148
  %v150 = vsel %vm143, %v149, 0.0
  %151 = vadd.xlane.f32.xlu0 %v150
  %v152 = vpop.xlane.xlu0 %151
  %v153 = vrcp.pop %v152
  %v154 = vmul.f32 %v149, %v153
  %155 = vst [vmem:[%s8] sm:$0x1] %v154
  %v156 = vpack.c.bf16 %v154, %v154
  %v157 = vld [vmem:[%s2 + $0x4] sm:$0xf]
  %v158 = vld [vmem:[%s2 + $0x14] sm:$0xf]
  %v159 = vld [vmem:[%s2 + $0x24] sm:$0xf]
  %v160 = vld [vmem:[%s2 + $0x34] sm:$0xf]
  %v161 = vld [vmem:[%s2 + $0x44] sm:$0xf]
  %v162 = vld [vmem:[%s2 + $0x54] sm:$0xf]
  %v163 = vld [vmem:[%s2 + $0x64] sm:$0xf]
  %v164 = vld [vmem:[%s2 + $0x74] sm:$0xf]
  %v165 = vld [vmem:[%s2 + $0x84] sm:$0xf]
  %v166 = vld [vmem:[%s2 + $0x94] sm:$0xf]
  %v167 = vld [vmem:[%s2 + $0xa4] sm:$0xf]
  %v168 = vld [vmem:[%s2 + $0xb4] sm:$0xf]
  %v169 = vld [vmem:[%s2 + $0xc4] sm:$0xf]
  %v170 = vld [vmem:[%s2 + $0xd4] sm:$0xf]
  %v171 = vld [vmem:[%s2 + $0xe4] sm:$0xf]
  %v172 = vld [vmem:[%s2 + $0xf4] sm:$0xf]
  %v189 = vunpack.c.l.b16 %v157
  %v190 = vunpack.c.l.b16 %v158
  %v191 = vunpack.c.l.b16 %v159
  %v192 = vunpack.c.l.b16 %v160
  %v193 = vunpack.c.l.b16 %v161
  %v194 = vunpack.c.l.b16 %v162
  %v195 = vunpack.c.l.b16 %v163
  %v196 = vunpack.c.l.b16 %v164
  %v197 = vunpack.c.l.b16 %v165
  %v198 = vunpack.c.l.b16 %v166
  %v199 = vunpack.c.l.b16 %v167
  %v200 = vunpack.c.l.b16 %v168
  %v201 = vunpack.c.l.b16 %v169
  %v202 = vunpack.c.l.b16 %v170
  %v203 = vunpack.c.l.b16 %v171
  %v204 = vunpack.c.l.b16 %v172
  %v205 = vpack.c.b16 %v190, %v189
  %v206 = vpack.c.b16 %v192, %v191
  %v207 = vpack.c.b16 %v194, %v193
  %v208 = vpack.c.b16 %v196, %v195
  %v209 = vpack.c.b16 %v198, %v197
  %v210 = vpack.c.b16 %v200, %v199
  %v211 = vpack.c.b16 %v202, %v201
  %v212 = vpack.c.b16 %v204, %v203
  %221 = vmatprep.subr.bf16.mxu0 0
  %222 = vmatpush1.bf16.msra.mxu0 %v205
  %223 = vmatprep.subr.bf16.mxu0 0
  %224 = vmatpush1.bf16.msra.mxu0 %v206
  %225 = vmatprep.subr.bf16.mxu0 0
  %226 = vmatpush1.bf16.msra.mxu0 %v207
  %227 = vmatprep.subr.bf16.mxu0 0
  %228 = vmatpush1.bf16.msra.mxu0 %v208
  %229 = vmatprep.subr.bf16.mxu0 0
  %230 = vmatpush1.bf16.msra.mxu0 %v209
  %231 = vmatprep.subr.bf16.mxu0 0
  %232 = vmatpush1.bf16.msra.mxu0 %v210
  %233 = vmatprep.subr.bf16.mxu0 0
  %234 = vmatpush1.bf16.msra.mxu0 %v211
  %235 = vmatprep.subr.bf16.mxu0 0
  %236 = vmatpush1.bf16.msra.mxu0 %v212
  %237 = vmatprep.subr.bf16.mxu0 0
  %238 = vmatpush1.bf16.msra.mxu0 0
  %239 = vmatprep.subr.bf16.mxu0 0
  %240 = vmatpush1.bf16.msra.mxu0 0
  %241 = vmatprep.subr.bf16.mxu0 0
  %242 = vmatpush1.bf16.msra.mxu0 0
  %243 = vmatprep.subr.bf16.mxu0 0
  %244 = vmatpush1.bf16.msra.mxu0 0
  %245 = vmatprep.subr.bf16.mxu0 0
  %246 = vmatpush1.bf16.msra.mxu0 0
  %247 = vmatprep.subr.bf16.mxu0 0
  %248 = vmatpush1.bf16.msra.mxu0 0
  %249 = vmatprep.subr.bf16.mxu0 0
  %250 = vmatpush1.bf16.msra.mxu0 0
  %251 = vmatprep.subr.bf16.mxu0 0
  %252 = vmatpush1.bf16.msra.mxu0 0
  %253 = vmatprep.mubr.bf16.mxu0 0
  %254 = vmatmul.mubr.bf16.gmra.mrb[0].mxu0 %v156
  %v255 = vpop.f32.mrb[0].mxu0
  %v256 = vadd.f32 0.0, %v255
  %v257 = vpop.f32.mrb[0].mxu0
  %v258 = vpop.f32.mrb[0].mxu0
  %v259 = vpop.f32.mrb[0].mxu0
  %260 = vdwg.mxu0
  %v261 = vpack.c.bf16 %v256, %v256
  %v262 = vld [vmem:[%s2 + $0x8] sm:$0xf]
  %v263 = vld [vmem:[%s2 + $0x18] sm:$0xf]
  %v264 = vld [vmem:[%s2 + $0x28] sm:$0xf]
  %v265 = vld [vmem:[%s2 + $0x38] sm:$0xf]
  %v266 = vld [vmem:[%s2 + $0x48] sm:$0xf]
  %v267 = vld [vmem:[%s2 + $0x58] sm:$0xf]
  %v268 = vld [vmem:[%s2 + $0x68] sm:$0xf]
  %v269 = vld [vmem:[%s2 + $0x78] sm:$0xf]
  %v270 = vld [vmem:[%s2 + $0x88] sm:$0xf]
  %v271 = vld [vmem:[%s2 + $0x98] sm:$0xf]
  %v272 = vld [vmem:[%s2 + $0xa8] sm:$0xf]
  %v273 = vld [vmem:[%s2 + $0xb8] sm:$0xf]
  %v274 = vld [vmem:[%s2 + $0xc8] sm:$0xf]
  %v275 = vld [vmem:[%s2 + $0xd8] sm:$0xf]
  %v276 = vld [vmem:[%s2 + $0xe8] sm:$0xf]
  %v277 = vld [vmem:[%s2 + $0xf8] sm:$0xf]
  %v294 = vunpack.c.l.b16 %v262
  %v295 = vunpack.c.l.b16 %v263
  %v296 = vunpack.c.l.b16 %v264
  %v297 = vunpack.c.l.b16 %v265
  %v298 = vunpack.c.l.b16 %v266
  %v299 = vunpack.c.l.b16 %v267
  %v300 = vunpack.c.l.b16 %v268
  %v301 = vunpack.c.l.b16 %v269
  %v302 = vunpack.c.l.b16 %v270
  %v303 = vunpack.c.l.b16 %v271
  %v304 = vunpack.c.l.b16 %v272
  %v305 = vunpack.c.l.b16 %v273
  %v306 = vunpack.c.l.b16 %v274
  %v307 = vunpack.c.l.b16 %v275
  %v308 = vunpack.c.l.b16 %v276
  %v309 = vunpack.c.l.b16 %v277
  %v310 = vpack.c.b16 %v295, %v294
  %v311 = vpack.c.b16 %v297, %v296
  %v312 = vpack.c.b16 %v299, %v298
  %v313 = vpack.c.b16 %v301, %v300
  %v314 = vpack.c.b16 %v303, %v302
  %v315 = vpack.c.b16 %v305, %v304
  %v316 = vpack.c.b16 %v307, %v306
  %v317 = vpack.c.b16 %v309, %v308
  %326 = vmatprep.subr.bf16.mxu0 0
  %327 = vmatpush1.bf16.msra.mxu0 %v310
  %328 = vmatprep.subr.bf16.mxu0 0
  %329 = vmatpush1.bf16.msra.mxu0 %v311
  %330 = vmatprep.subr.bf16.mxu0 0
  %331 = vmatpush1.bf16.msra.mxu0 %v312
  %332 = vmatprep.subr.bf16.mxu0 0
  %333 = vmatpush1.bf16.msra.mxu0 %v313
  %334 = vmatprep.subr.bf16.mxu0 0
  %335 = vmatpush1.bf16.msra.mxu0 %v314
  %336 = vmatprep.subr.bf16.mxu0 0
  %337 = vmatpush1.bf16.msra.mxu0 %v315
  %338 = vmatprep.subr.bf16.mxu0 0
  %339 = vmatpush1.bf16.msra.mxu0 %v316
  %340 = vmatprep.subr.bf16.mxu0 0
  %341 = vmatpush1.bf16.msra.mxu0 %v317
  %342 = vmatprep.subr.bf16.mxu0 0
  %343 = vmatpush1.bf16.msra.mxu0 0
  %344 = vmatprep.subr.bf16.mxu0 0
  %345 = vmatpush1.bf16.msra.mxu0 0
  %346 = vmatprep.subr.bf16.mxu0 0
  %347 = vmatpush1.bf16.msra.mxu0 0
  %348 = vmatprep.subr.bf16.mxu0 0
  %349 = vmatpush1.bf16.msra.mxu0 0
  %350 = vmatprep.subr.bf16.mxu0 0
  %351 = vmatpush1.bf16.msra.mxu0 0
  %352 = vmatprep.subr.bf16.mxu0 0
  %353 = vmatpush1.bf16.msra.mxu0 0
  %354 = vmatprep.subr.bf16.mxu0 0
  %355 = vmatpush1.bf16.msra.mxu0 0
  %356 = vmatprep.subr.bf16.mxu0 0
  %357 = vmatpush1.bf16.msra.mxu0 0
  %358 = vmatprep.mubr.bf16.mxu0 0
  %359 = vmatmul.mubr.bf16.gmra.mrb[0].mxu0 %v261
  %v360 = vpop.f32.mrb[0].mxu0
  %v361 = vadd.f32 0.0, %v360
  %v362 = vpop.f32.mrb[0].mxu0
  %v363 = vpop.f32.mrb[0].mxu0
  %v364 = vpop.f32.mrb[0].mxu0
  %365 = vdwg.mxu0
  %v366 = vadd.f32 %v37, %v361
  %v367 = vmax.f32 %v366, 0.0
  %v368 = vpack.c.bf16 %v367, %v367
  %v369 = vld [vmem:[%s3] sm:$0xff]
  %v370 = vld [vmem:[%s3 + $0x8] sm:$0xff]
  %v371 = vld [vmem:[%s3 + $0x10] sm:$0xff]
  %v372 = vld [vmem:[%s3 + $0x18] sm:$0xff]
  %v373 = vld [vmem:[%s3 + $0x20] sm:$0xff]
  %v374 = vld [vmem:[%s3 + $0x28] sm:$0xff]
  %v375 = vld [vmem:[%s3 + $0x30] sm:$0xff]
  %v376 = vld [vmem:[%s3 + $0x38] sm:$0xff]
  %v377 = vld [vmem:[%s3 + $0x40] sm:$0xff]
  %v378 = vld [vmem:[%s3 + $0x48] sm:$0xff]
  %v379 = vld [vmem:[%s3 + $0x50] sm:$0xff]
  %v380 = vld [vmem:[%s3 + $0x58] sm:$0xff]
  %v381 = vld [vmem:[%s3 + $0x60] sm:$0xff]
  %v382 = vld [vmem:[%s3 + $0x68] sm:$0xff]
  %v383 = vld [vmem:[%s3 + $0x70] sm:$0xff]
  %v384 = vld [vmem:[%s3 + $0x78] sm:$0xff]
  %v385 = vld [vmem:[%s3 + $0x80] sm:$0xff]
  %v386 = vld [vmem:[%s3 + $0x88] sm:$0xff]
  %v387 = vld [vmem:[%s3 + $0x90] sm:$0xff]
  %v388 = vld [vmem:[%s3 + $0x98] sm:$0xff]
  %v389 = vld [vmem:[%s3 + $0xa0] sm:$0xff]
  %v390 = vld [vmem:[%s3 + $0xa8] sm:$0xff]
  %v391 = vld [vmem:[%s3 + $0xb0] sm:$0xff]
  %v392 = vld [vmem:[%s3 + $0xb8] sm:$0xff]
  %v393 = vld [vmem:[%s3 + $0xc0] sm:$0xff]
  %v394 = vld [vmem:[%s3 + $0xc8] sm:$0xff]
  %v395 = vld [vmem:[%s3 + $0xd0] sm:$0xff]
  %v396 = vld [vmem:[%s3 + $0xd8] sm:$0xff]
  %v397 = vld [vmem:[%s3 + $0xe0] sm:$0xff]
  %v398 = vld [vmem:[%s3 + $0xe8] sm:$0xff]
  %v399 = vld [vmem:[%s3 + $0xf0] sm:$0xff]
  %v400 = vld [vmem:[%s3 + $0xf8] sm:$0xff]
  %v401 = vld [vmem:[%s3 + $0x100] sm:$0xff]
  %v402 = vld [vmem:[%s3 + $0x108] sm:$0xff]
  %v403 = vld [vmem:[%s3 + $0x110] sm:$0xff]
  %v404 = vld [vmem:[%s3 + $0x118] sm:$0xff]
  %v405 = vld [vmem:[%s3 + $0x120] sm:$0xff]
  %v406 = vld [vmem:[%s3 + $0x128] sm:$0xff]
  %v407 = vld [vmem:[%s3 + $0x130] sm:$0xff]
  %v408 = vld [vmem:[%s3 + $0x138] sm:$0xff]
  %v409 = vld [vmem:[%s3 + $0x140] sm:$0xff]
  %v410 = vld [vmem:[%s3 + $0x148] sm:$0xff]
  %v411 = vld [vmem:[%s3 + $0x150] sm:$0xff]
  %v412 = vld [vmem:[%s3 + $0x158] sm:$0xff]
  %v413 = vld [vmem:[%s3 + $0x160] sm:$0xff]
  %v414 = vld [vmem:[%s3 + $0x168] sm:$0xff]
  %v415 = vld [vmem:[%s3 + $0x170] sm:$0xff]
  %v416 = vld [vmem:[%s3 + $0x178] sm:$0xff]
  %v417 = vld [vmem:[%s3 + $0x180] sm:$0xff]
  %v418 = vld [vmem:[%s3 + $0x188] sm:$0xff]
  %v419 = vld [vmem:[%s3 + $0x190] sm:$0xff]
  %v420 = vld [vmem:[%s3 + $0x198] sm:$0xff]
  %v421 = vld [vmem:[%s3 + $0x1a0] sm:$0xff]
  %v422 = vld [vmem:[%s3 + $0x1a8] sm:$0xff]
  %v423 = vld [vmem:[%s3 + $0x1b0] sm:$0xff]
  %v424 = vld [vmem:[%s3 + $0x1b8] sm:$0xff]
  %v425 = vld [vmem:[%s3 + $0x1c0] sm:$0xff]
  %v426 = vld [vmem:[%s3 + $0x1c8] sm:$0xff]
  %v427 = vld [vmem:[%s3 + $0x1d0] sm:$0xff]
  %v428 = vld [vmem:[%s3 + $0x1d8] sm:$0xff]
  %v429 = vld [vmem:[%s3 + $0x1e0] sm:$0xff]
  %v430 = vld [vmem:[%s3 + $0x1e8] sm:$0xff]
  %v431 = vld [vmem:[%s3 + $0x1f0] sm:$0xff]
  %v432 = vld [vmem:[%s3 + $0x1f8] sm:$0xff]
  %v497 = vunpack.c.l.b16 %v369
  %v498 = vunpack.c.h.b16 %v369
  %v499 = vunpack.c.l.b16 %v370
  %v500 = vunpack.c.h.b16 %v370
  %v501 = vunpack.c.l.b16 %v371
  %v502 = vunpack.c.h.b16 %v371
  %v503 = vunpack.c.l.b16 %v372
  %v504 = vunpack.c.h.b16 %v372
  %v505 = vunpack.c.l.b16 %v373
  %v506 = vunpack.c.h.b16 %v373
  %v507 = vunpack.c.l.b16 %v374
  %v508 = vunpack.c.h.b16 %v374
  %v509 = vunpack.c.l.b16 %v375
  %v510 = vunpack.c.h.b16 %v375
  %v511 = vunpack.c.l.b16 %v376
  %v512 = vunpack.c.h.b16 %v376
  %v513 = vunpack.c.l.b16 %v377
  %v514 = vunpack.c.h.b16 %v377
  %v515 = vunpack.c.l.b16 %v378
  %v516 = vunpack.c.h.b16 %v378
  %v517 = vunpack.c.l.b16 %v379
  %v518 = vunpack.c.h.b16 %v379
  %v519 = vunpack.c.l.b16 %v380
  %v520 = vunpack.c.h.b16 %v380
  %v521 = vunpack.c.l.b16 %v381
  %v522 = vunpack.c.h.b16 %v381
  %v523 = vunpack.c.l.b16 %v382
  %v524 = vunpack.c.h.b16 %v382
  %v525 = vunpack.c.l.b16 %v383
  %v526 = vunpack.c.h.b16 %v383
  %v527 = vunpack.c.l.b16 %v384
  %v528 = vunpack.c.h.b16 %v384
  %v529 = vunpack.c.l.b16 %v385
  %v530 = vunpack.c.h.b16 %v385
  %v531 = vunpack.c.l.b16 %v386
  %v532 = vunpack.c.h.b16 %v386
  %v533 = vunpack.c.l.b16 %v387
  %v534 = vunpack.c.h.b16 %v387
  %v535 = vunpack.c.l.b16 %v388
  %v536 = vunpack.c.h.b16 %v388
  %v537 = vunpack.c.l.b16 %v389
  %v538 = vunpack.c.h.b16 %v389
  %v539 = vunpack.c.l.b16 %v390
  %v540 = vunpack.c.h.b16 %v390
  %v541 = vunpack.c.l.b16 %v391
  %v542 = vunpack.c.h.b16 %v391
  %v543 = vunpack.c.l.b16 %v392
  %v544 = vunpack.c.h.b16 %v392
  %v545 = vunpack.c.l.b16 %v393
  %v546 = vunpack.c.h.b16 %v393
  %v547 = vunpack.c.l.b16 %v394
  %v548 = vunpack.c.h.b16 %v394
  %v549 = vunpack.c.l.b16 %v395
  %v550 = vunpack.c.h.b16 %v395
  %v551 = vunpack.c.l.b16 %v396
  %v552 = vunpack.c.h.b16 %v396
  %v553 = vunpack.c.l.b16 %v397
  %v554 = vunpack.c.h.b16 %v397
  %v555 = vunpack.c.l.b16 %v398
  %v556 = vunpack.c.h.b16 %v398
  %v557 = vunpack.c.l.b16 %v399
  %v558 = vunpack.c.h.b16 %v399
  %v559 = vunpack.c.l.b16 %v400
  %v560 = vunpack.c.h.b16 %v400
  %v561 = vunpack.c.l.b16 %v401
  %v562 = vunpack.c.h.b16 %v401
  %v563 = vunpack.c.l.b16 %v402
  %v564 = vunpack.c.h.b16 %v402
  %v565 = vunpack.c.l.b16 %v403
  %v566 = vunpack.c.h.b16 %v403
  %v567 = vunpack.c.l.b16 %v404
  %v568 = vunpack.c.h.b16 %v404
  %v569 = vunpack.c.l.b16 %v405
  %v570 = vunpack.c.h.b16 %v405
  %v571 = vunpack.c.l.b16 %v406
  %v572 = vunpack.c.h.b16 %v406
  %v573 = vunpack.c.l.b16 %v407
  %v574 = vunpack.c.h.b16 %v407
  %v575 = vunpack.c.l.b16 %v408
  %v576 = vunpack.c.h.b16 %v408
  %v577 = vunpack.c.l.b16 %v409
  %v578 = vunpack.c.h.b16 %v409
  %v579 = vunpack.c.l.b16 %v410
  %v580 = vunpack.c.h.b16 %v410
  %v581 = vunpack.c.l.b16 %v411
  %v582 = vunpack.c.h.b16 %v411
  %v583 = vunpack.c.l.b16 %v412
  %v584 = vunpack.c.h.b16 %v412
  %v585 = vunpack.c.l.b16 %v413
  %v586 = vunpack.c.h.b16 %v413
  %v587 = vunpack.c.l.b16 %v414
  %v588 = vunpack.c.h.b16 %v414
  %v589 = vunpack.c.l.b16 %v415
  %v590 = vunpack.c.h.b16 %v415
  %v591 = vunpack.c.l.b16 %v416
  %v592 = vunpack.c.h.b16 %v416
  %v593 = vunpack.c.l.b16 %v417
  %v594 = vunpack.c.h.b16 %v417
  %v595 = vunpack.c.l.b16 %v418
  %v596 = vunpack.c.h.b16 %v418
  %v597 = vunpack.c.l.b16 %v419
  %v598 = vunpack.c.h.b16 %v419
  %v599 = vunpack.c.l.b16 %v420
  %v600 = vunpack.c.h.b16 %v420
  %v601 = vunpack.c.l.b16 %v421
  %v602 = vunpack.c.h.b16 %v421
  %v603 = vunpack.c.l.b16 %v422
  %v604 = vunpack.c.h.b16 %v422
  %v605 = vunpack.c.l.b16 %v423
  %v606 = vunpack.c.h.b16 %v423
  %v607 = vunpack.c.l.b16 %v424
  %v608 = vunpack.c.h.b16 %v424
  %v609 = vunpack.c.l.b16 %v425
  %v610 = vunpack.c.h.b16 %v425
  %v611 = vunpack.c.l.b16 %v426
  %v612 = vunpack.c.h.b16 %v426
  %v613 = vunpack.c.l.b16 %v427
  %v614 = vunpack.c.h.b16 %v427
  %v615 = vunpack.c.l.b16 %v428
  %v616 = vunpack.c.h.b16 %v428
  %v617 = vunpack.c.l.b16 %v429
  %v618 = vunpack.c.h.b16 %v429
  %v619 = vunpack.c.l.b16 %v430
  %v620 = vunpack.c.h.b16 %v430
  %v621 = vunpack.c.l.b16 %v431
  %v622 = vunpack.c.h.b16 %v431
  %v623 = vunpack.c.l.b16 %v432
  %v624 = vunpack.c.h.b16 %v432
  %v625 = vpack.c.b16 %v501, %v497
  %v626 = vpack.c.b16 %v502, %v498
  %v627 = vpack.c.b16 %v503, %v499
  %v628 = vpack.c.b16 %v504, %v500
  %v629 = vpack.c.b16 %v509, %v505
  %v630 = vpack.c.b16 %v510, %v506
  %v631 = vpack.c.b16 %v511, %v507
  %v632 = vpack.c.b16 %v512, %v508
  %v633 = vpack.c.b16 %v517, %v513
  %v634 = vpack.c.b16 %v518, %v514
  %v635 = vpack.c.b16 %v519, %v515
  %v636 = vpack.c.b16 %v520, %v516
  %v637 = vpack.c.b16 %v525, %v521
  %v638 = vpack.c.b16 %v526, %v522
  %v639 = vpack.c.b16 %v527, %v523
  %v640 = vpack.c.b16 %v528, %v524
  %v641 = vpack.c.b16 %v533, %v529
  %v642 = vpack.c.b16 %v534, %v530
  %v643 = vpack.c.b16 %v535, %v531
  %v644 = vpack.c.b16 %v536, %v532
  %v645 = vpack.c.b16 %v541, %v537
  %v646 = vpack.c.b16 %v542, %v538
  %v647 = vpack.c.b16 %v543, %v539
  %v648 = vpack.c.b16 %v544, %v540
  %v649 = vpack.c.b16 %v549, %v545
  %v650 = vpack.c.b16 %v550, %v546
  %v651 = vpack.c.b16 %v551, %v547
  %v652 = vpack.c.b16 %v552, %v548
  %v653 = vpack.c.b16 %v557, %v553
  %v654 = vpack.c.b16 %v558, %v554
  %v655 = vpack.c.b16 %v559, %v555
  %v656 = vpack.c.b16 %v560, %v556
  %v657 = vpack.c.b16 %v565, %v561
  %v658 = vpack.c.b16 %v566, %v562
  %v659 = vpack.c.b16 %v567, %v563
  %v660 = vpack.c.b16 %v568, %v564
  %v661 = vpack.c.b16 %v573, %v569
  %v662 = vpack.c.b16 %v574, %v570
  %v663 = vpack.c.b16 %v575, %v571
  %v664 = vpack.c.b16 %v576, %v572
  %v665 = vpack.c.b16 %v581, %v577
  %v666 = vpack.c.b16 %v582, %v578
  %v667 = vpack.c.b16 %v583, %v579
  %v668 = vpack.c.b16 %v584, %v580
  %v669 = vpack.c.b16 %v589, %v585
  %v670 = vpack.c.b16 %v590, %v586
  %v671 = vpack.c.b16 %v591, %v587
  %v672 = vpack.c.b16 %v592, %v588
  %v673 = vpack.c.b16 %v597, %v593
  %v674 = vpack.c.b16 %v598, %v594
  %v675 = vpack.c.b16 %v599, %v595
  %v676 = vpack.c.b16 %v600, %v596
  %v677 = vpack.c.b16 %v605, %v601
  %v678 = vpack.c.b16 %v606, %v602
  %v679 = vpack.c.b16 %v607, %v603
  %v680 = vpack.c.b16 %v608, %v604
  %v681 = vpack.c.b16 %v613, %v609
  %v682 = vpack.c.b16 %v614, %v610
  %v683 = vpack.c.b16 %v615, %v611
  %v684 = vpack.c.b16 %v616, %v612
  %v685 = vpack.c.b16 %v621, %v617
  %v686 = vpack.c.b16 %v622, %v618
  %v687 = vpack.c.b16 %v623, %v619
  %v688 = vpack.c.b16 %v624, %v620
  %v754 = vlaneseq
  %v755 = vshrl.u32 %v754, 7
  %v756 = vsub.s32 0, %v755
  %v757 = vrot.slane %v31, %v756
  %v758 = vlaneseq
  %v759 = vshrl.u32 %v758, 7
  %v760 = vsub.s32 1, %v759
  %v761 = vrot.slane %v31, %v760
  %v762 = vlaneseq
  %v763 = vshrl.u32 %v762, 7
  %v764 = vsub.s32 2, %v763
  %v765 = vrot.slane %v31, %v764
  %v766 = vlaneseq
  %v767 = vshrl.u32 %v766, 7
  %v768 = vsub.s32 3, %v767
  %v769 = vrot.slane %v31, %v768
  %774 = vmatprep.subr.bf16.mxu0 %v626
  %775 = vmatpush1.bf16.msra.mxu0 %v625
  %776 = vmatprep.subr.bf16.mxu0 %v630
  %777 = vmatpush1.bf16.msra.mxu0 %v629
  %778 = vmatprep.subr.bf16.mxu0 %v634
  %779 = vmatpush1.bf16.msra.mxu0 %v633
  %780 = vmatprep.subr.bf16.mxu0 %v638
  %781 = vmatpush1.bf16.msra.mxu0 %v637
  %782 = vmatprep.subr.bf16.mxu0 %v642
  %783 = vmatpush1.bf16.msra.mxu0 %v641
  %784 = vmatprep.subr.bf16.mxu0 %v646
  %785 = vmatpush1.bf16.msra.mxu0 %v645
  %786 = vmatprep.subr.bf16.mxu0 %v650
  %787 = vmatpush1.bf16.msra.mxu0 %v649
  %788 = vmatprep.subr.bf16.mxu0 %v654
  %789 = vmatpush1.bf16.msra.mxu0 %v653
  %790 = vmatprep.subr.bf16.mxu0 %v658
  %791 = vmatpush1.bf16.msra.mxu0 %v657
  %792 = vmatprep.subr.bf16.mxu0 %v662
  %793 = vmatpush1.bf16.msra.mxu0 %v661
  %794 = vmatprep.subr.bf16.mxu0 %v666
  %795 = vmatpush1.bf16.msra.mxu0 %v665
  %796 = vmatprep.subr.bf16.mxu0 %v670
  %797 = vmatpush1.bf16.msra.mxu0 %v669
  %798 = vmatprep.subr.bf16.mxu0 %v674
  %799 = vmatpush1.bf16.msra.mxu0 %v673
  %800 = vmatprep.subr.bf16.mxu0 %v678
  %801 = vmatpush1.bf16.msra.mxu0 %v677
  %802 = vmatprep.subr.bf16.mxu0 %v682
  %803 = vmatpush1.bf16.msra.mxu0 %v681
  %804 = vmatprep.subr.bf16.mxu0 %v686
  %805 = vmatpush1.bf16.msra.mxu0 %v685
  %806 = vmatprep.mubr.bf16.mxu0 %v34
  %807 = vmatmul.mubr.bf16.gmra.mrb[0].mxu0 %v368
  %v808 = vpop.f32.mrb[0].mxu0
  %v809 = vadd.f32 %v757, %v808
  %v810 = vpop.f32.mrb[0].mxu0
  %v811 = vadd.f32 %v761, %v810
  %v812 = vpop.f32.mrb[0].mxu0
  %v813 = vpop.f32.mrb[0].mxu0
  %814 = vdwg.mxu0
  %815 = vmatprep.subr.bf16.mxu0 %v628
  %816 = vmatpush1.bf16.msra.mxu0 %v627
  %817 = vmatprep.subr.bf16.mxu0 %v632
  %818 = vmatpush1.bf16.msra.mxu0 %v631
  %819 = vmatprep.subr.bf16.mxu0 %v636
  %820 = vmatpush1.bf16.msra.mxu0 %v635
  %821 = vmatprep.subr.bf16.mxu0 %v640
  %822 = vmatpush1.bf16.msra.mxu0 %v639
  %823 = vmatprep.subr.bf16.mxu0 %v644
  %824 = vmatpush1.bf16.msra.mxu0 %v643
  %825 = vmatprep.subr.bf16.mxu0 %v648
  %826 = vmatpush1.bf16.msra.mxu0 %v647
  %827 = vmatprep.subr.bf16.mxu0 %v652
  %828 = vmatpush1.bf16.msra.mxu0 %v651
  %829 = vmatprep.subr.bf16.mxu0 %v656
  %830 = vmatpush1.bf16.msra.mxu0 %v655
  %831 = vmatprep.subr.bf16.mxu0 %v660
  %832 = vmatpush1.bf16.msra.mxu0 %v659
  %833 = vmatprep.subr.bf16.mxu0 %v664
  %834 = vmatpush1.bf16.msra.mxu0 %v663
  %835 = vmatprep.subr.bf16.mxu0 %v668
  %836 = vmatpush1.bf16.msra.mxu0 %v667
  %837 = vmatprep.subr.bf16.mxu0 %v672
  %838 = vmatpush1.bf16.msra.mxu0 %v671
  %839 = vmatprep.subr.bf16.mxu0 %v676
  %840 = vmatpush1.bf16.msra.mxu0 %v675
  %841 = vmatprep.subr.bf16.mxu0 %v680
  %842 = vmatpush1.bf16.msra.mxu0 %v679
  %843 = vmatprep.subr.bf16.mxu0 %v684
  %844 = vmatpush1.bf16.msra.mxu0 %v683
  %845 = vmatprep.subr.bf16.mxu0 %v688
  %846 = vmatpush1.bf16.msra.mxu0 %v687
  %847 = vmatprep.mubr.bf16.mxu0 %v34
  %848 = vmatmul.mubr.bf16.gmra.mrb[0].mxu0 %v368
  %v849 = vpop.f32.mrb[0].mxu0
  %v850 = vadd.f32 %v765, %v849
  %v851 = vpop.f32.mrb[0].mxu0
  %v852 = vadd.f32 %v769, %v851
  %v853 = vpop.f32.mrb[0].mxu0
  %v854 = vpop.f32.mrb[0].mxu0
  %855 = vdwg.mxu0
  %v856 = vxor.u32 %v809, 2147483648
  %v857 = vmul.f32 %v856, 1.442695
  %v858 = vpow.pop %v857
  %v859 = vadd.f32 %v858, 1.0
  %v860 = vrcp.pop %v859
  %v861 = vmul.f32 1.0, %v860
  %v862 = vxor.u32 %v811, 2147483648
  %v863 = vmul.f32 %v862, 1.442695
  %v864 = vpow.pop %v863
  %v865 = vadd.f32 %v864, 1.0
  %v866 = vrcp.pop %v865
  %v867 = vmul.f32 1.0, %v866
  %v868 = vmul.f32 %v861, %v852
  %v869 = vadd.f32 %v850, %v868
  %v870 = vtanh.pop %v869
  %v871 = vsub.f32 1.0, %v867
  %v872 = vmul.f32 %v871, %v870
  %v873 = vmul.f32 %v867, %v33
  %v874 = vadd.f32 %v872, %v873
  %v875 = vpack.c.bf16 %v874, %v874
  %v876 = vld [vmem:[%s2 + $0xc] sm:$0xf]
  %v877 = vld [vmem:[%s2 + $0x1c] sm:$0xf]
  %v878 = vld [vmem:[%s2 + $0x2c] sm:$0xf]
  %v879 = vld [vmem:[%s2 + $0x3c] sm:$0xf]
  %v880 = vld [vmem:[%s2 + $0x4c] sm:$0xf]
  %v881 = vld [vmem:[%s2 + $0x5c] sm:$0xf]
  %v882 = vld [vmem:[%s2 + $0x6c] sm:$0xf]
  %v883 = vld [vmem:[%s2 + $0x7c] sm:$0xf]
  %v884 = vld [vmem:[%s2 + $0x8c] sm:$0xf]
  %v885 = vld [vmem:[%s2 + $0x9c] sm:$0xf]
  %v886 = vld [vmem:[%s2 + $0xac] sm:$0xf]
  %v887 = vld [vmem:[%s2 + $0xbc] sm:$0xf]
  %v888 = vld [vmem:[%s2 + $0xcc] sm:$0xf]
  %v889 = vld [vmem:[%s2 + $0xdc] sm:$0xf]
  %v890 = vld [vmem:[%s2 + $0xec] sm:$0xf]
  %v891 = vld [vmem:[%s2 + $0xfc] sm:$0xf]
  %v908 = vunpack.c.l.b16 %v876
  %v909 = vunpack.c.l.b16 %v877
  %v910 = vunpack.c.l.b16 %v878
  %v911 = vunpack.c.l.b16 %v879
  %v912 = vunpack.c.l.b16 %v880
  %v913 = vunpack.c.l.b16 %v881
  %v914 = vunpack.c.l.b16 %v882
  %v915 = vunpack.c.l.b16 %v883
  %v916 = vunpack.c.l.b16 %v884
  %v917 = vunpack.c.l.b16 %v885
  %v918 = vunpack.c.l.b16 %v886
  %v919 = vunpack.c.l.b16 %v887
  %v920 = vunpack.c.l.b16 %v888
  %v921 = vunpack.c.l.b16 %v889
  %v922 = vunpack.c.l.b16 %v890
  %v923 = vunpack.c.l.b16 %v891
  %v924 = vpack.c.b16 %v909, %v908
  %v925 = vpack.c.b16 %v911, %v910
  %v926 = vpack.c.b16 %v913, %v912
  %v927 = vpack.c.b16 %v915, %v914
  %v928 = vpack.c.b16 %v917, %v916
  %v929 = vpack.c.b16 %v919, %v918
  %v930 = vpack.c.b16 %v921, %v920
  %v931 = vpack.c.b16 %v923, %v922
  %940 = vmatprep.subr.bf16.mxu0 0
  %941 = vmatpush1.bf16.msra.mxu0 %v924
  %942 = vmatprep.subr.bf16.mxu0 0
  %943 = vmatpush1.bf16.msra.mxu0 %v925
  %944 = vmatprep.subr.bf16.mxu0 0
  %945 = vmatpush1.bf16.msra.mxu0 %v926
  %946 = vmatprep.subr.bf16.mxu0 0
  %947 = vmatpush1.bf16.msra.mxu0 %v927
  %948 = vmatprep.subr.bf16.mxu0 0
  %949 = vmatpush1.bf16.msra.mxu0 %v928
  %950 = vmatprep.subr.bf16.mxu0 0
  %951 = vmatpush1.bf16.msra.mxu0 %v929
  %952 = vmatprep.subr.bf16.mxu0 0
  %953 = vmatpush1.bf16.msra.mxu0 %v930
  %954 = vmatprep.subr.bf16.mxu0 0
  %955 = vmatpush1.bf16.msra.mxu0 %v931
  %956 = vmatprep.subr.bf16.mxu0 0
  %957 = vmatpush1.bf16.msra.mxu0 0
  %958 = vmatprep.subr.bf16.mxu0 0
  %959 = vmatpush1.bf16.msra.mxu0 0
  %960 = vmatprep.subr.bf16.mxu0 0
  %961 = vmatpush1.bf16.msra.mxu0 0
  %962 = vmatprep.subr.bf16.mxu0 0
  %963 = vmatpush1.bf16.msra.mxu0 0
  %964 = vmatprep.subr.bf16.mxu0 0
  %965 = vmatpush1.bf16.msra.mxu0 0
  %966 = vmatprep.subr.bf16.mxu0 0
  %967 = vmatpush1.bf16.msra.mxu0 0
  %968 = vmatprep.subr.bf16.mxu0 0
  %969 = vmatpush1.bf16.msra.mxu0 0
  %970 = vmatprep.subr.bf16.mxu0 0
  %971 = vmatpush1.bf16.msra.mxu0 0
  %972 = vmatprep.mubr.bf16.mxu0 0
  %973 = vmatmul.mubr.bf16.gmra.mrb[0].mxu0 %v875
  %v974 = vpop.f32.mrb[0].mxu0
  %v975 = vadd.f32 %v32, %v974
  %v976 = vpop.f32.mrb[0].mxu0
  %v977 = vpop.f32.mrb[0].mxu0
  %v978 = vpop.f32.mrb[0].mxu0
  %979 = vdwg.mxu0
  %v980 = vsel %vm29, %v975, -1e+30
  %v981 = vsel %vm143, %v980, -inf
  %982 = vmax.xlane.f32.xlu0 %v981
  %v983 = vpop.xlane.xlu0 %982
  %v984 = vsub.f32 %v980, %v983
  %v985 = vmul.f32 %v984, 1.442695
  %v986 = vpow.pop %v985
  %v987 = vsel %vm143, %v986, 0.0
  %988 = vadd.xlane.f32.xlu0 %v987
  %v989 = vpop.xlane.xlu0 %988
  %v990 = vlog2.pop %v989
  %v991 = vmul.f32 %v990, 0.6931472
  %v992 = vadd.f32 %v983, %v991
  %v993 = vsub.f32 %v980, %v992
  %994 = vst [vmem:[%s6] sm:$0x1] %v993
  %995 = vst [vmem:[%s7] sm:$0x1] %v874
  // Predicated region
  $region22: #{_forward_impl.1} parent=0 // pred_check
    _
  $region23: #{_forward_impl.1} parent=0 // pred_check_branch
    %997 = sbr.rel (0) target = $region25
  $region24: #{_forward_impl.1} parent=0 // pred_region
    _
  $region25: #{_forward_impl.1} parent=0 // pred_fallthru
    _
  // Predicated region
  $region26: #{_forward_impl.1} parent=0 // pred_check
    _
  $region27: #{_forward_impl.1} parent=0 // pred_check_branch
    %999 = sbr.rel (0) target = $region29
  $region28: #{_forward_impl.1} parent=0 // pred_region
    _
  $region29: #{_forward_impl.1} parent=0 // pred_fallthru
    _
  // Predicated region
  $region30: #{_forward_impl.1} parent=0 // pred_check
    _
  $region31: #{_forward_impl.1} parent=0 // pred_check_branch
    %1001 = sbr.rel (0) target = $region33
  $region32: #{_forward_impl.1} parent=0 // pred_region
    _
  $region33: #{_forward_impl.1} parent=0 // pred_fallthru
    _
  // Predicated region
  $region34: #{_forward_impl.1} parent=0 // pred_check
    _
  $region35: #{_forward_impl.1} parent=0 // pred_check_branch
    %1003 = sbr.rel (0) target = $region37
  $region36: #{_forward_impl.1} parent=0 // pred_region
    _
  $region37: #{_forward_impl.1} parent=0 // pred_fallthru
    _
  // Predicated region
  $region38: #{_forward_impl.1} parent=0 // pred_check
    _
  $region39: #{_forward_impl.1} parent=0 // pred_check_branch
    %1005 = sbr.rel (0) target = $region41
  $region40: #{_forward_impl.1} parent=0 // pred_region
    _
  $region41: #{_forward_impl.1} parent=0 // pred_fallthru
    _
  // Predicated region
  $region42: #{_forward_impl.1} parent=0 // pred_check
    _
  $region43: #{_forward_impl.1} parent=0 // pred_check_branch
    %1007 = sbr.rel (0) target = $region45
  $region44: #{_forward_impl.1} parent=0 // pred_region
    _
  $region45: #{_forward_impl.1} parent=0 // pred_fallthru
    _

</llo_original>
